<compile_context>
chip_gen: v7x
topology: tpu7x:2x2x1
jax: 0.10.0
libtpu: 0.0.40
codegen_flags: <defaults>
</compile_context>

<pallas_src>
import functools

import jax
import jax.numpy as jnp
from jax import lax
from jax.experimental import pallas as pl
from jax.experimental.pallas import tpu as pltpu


def _mse_cos_kernel(seq_a_ref, mask_a_ref, seq_b_ref, mask_b_ref,
                    cnt_a_ref, cnt_b_ref, labels_ref, w_ref, bias_ref,
                    sqerr_ref,
                    acc_a, acc_b, *, scale):
    si = pl.program_id(1)

    @pl.when(si == 0)
    def _init():
        acc_a[...] = jnp.zeros_like(acc_a)
        acc_b[...] = jnp.zeros_like(acc_b)

    # Masked pooled-sum for this S tile, batched over the tb examples of the
    # block and routed through the MXU:
    #   (tb, 1, ts) @ (tb, ts, H) -> (tb, 1, H), f32 accumulation.
    acc_a[...] += jnp.einsum('bos,bsh->boh', mask_a_ref[...], seq_a_ref[...],
                             preferred_element_type=jnp.float32)
    acc_b[...] += jnp.einsum('bos,bsh->boh', mask_b_ref[...], seq_b_ref[...],
                             preferred_element_type=jnp.float32)

    @pl.when(si == pl.num_programs(1) - 1)
    def _finalize():
        tb = acc_a.shape[0]
        w = w_ref[...]                           # (H, E_pad) f32
        bias = bias_ref[...]                     # (1, E_pad) f32
        # Mean pooling with exact division by the per-example token count
        # (pool-before-project; the +bias survives the masked mean unchanged).
        # NOTE: a fully padded row (count == 0) yields inf/nan, same as the
        # PyTorch reference.
        pooled_a = acc_a[...][:, 0, :] / cnt_a_ref[...][:, 0, :]   # (tb, H)
        pooled_b = acc_b[...][:, 0, :] / cnt_b_ref[...][:, 0, :]
        emb_a = jnp.dot(pooled_a, w, preferred_element_type=jnp.float32) + bias
        emb_b = jnp.dot(pooled_b, w, preferred_element_type=jnp.float32) + bias
        # F.normalize(p=2, dim=-1, eps=1e-12): x / max(||x||, eps)
        #   == x * rsqrt(max(sum(x*x), eps^2))
        inv_a = lax.rsqrt(jnp.maximum(
            jnp.sum(emb_a * emb_a, axis=-1, keepdims=True), 1e-24))
        inv_b = lax.rsqrt(jnp.maximum(
            jnp.sum(emb_b * emb_b, axis=-1, keepdims=True), 1e-24))
        sim = jnp.sum((emb_a * inv_a) * (emb_b * inv_b),
                      axis=-1, keepdims=True) * scale               # (tb, 1)
        diff = sim - labels_ref[...][:, 0, :]                        # (tb, 1)
        sq = diff * diff
        # Lane-dense per-block output (tb, 1, 128) -- no masked scalar stores.
        sqerr_ref[...] = jnp.broadcast_to(sq[:, None, :], (tb, 1, 128))


def _pick_b_tile(B, max_tb=8):
    """Largest batch tile <= max_tb dividing B, preferring B//tb >= 2 so the
    leading 'parallel' grid axis can shard across v7x's two TensorCores."""
    if B <= 1:
        return 1
    limit = min(max_tb, max(1, B // 2))
    for tb in range(limit, 0, -1):
        if B % tb == 0:
            return tb
    return 1


def _pick_s_tile(S, H, tb, itemsize, budget_bytes=24 << 20):
    """S tile: a multiple of 128 dividing S (lane axis of the mask block), or
    S itself.  Sized so the two double-buffered (tb, ts, H) sequence blocks
    stay within `budget_bytes` (fits v7x's 64 MiB VMEM with headroom)."""
    if S % 128 != 0:
        return S                     # full-extent fallback (valid block shape)
    per_elem = 4 * tb * H * itemsize  # 2 tensors x 2 buffers x tb x H bytes / s
    max_ts = max(128, (budget_bytes // per_elem) // 128 * 128)
    best = 128
    t = 128
    while t <= min(S, max_ts):
        if S % t == 0:
            best = t
        t += 128
    return best


def mse_cosine_similarity(seq_a, mask_a, seq_b, mask_b, w, b, labels,
                          scale=1.0, s_tile=None, b_tile=None):
    """seq_*: (B,S,H) encoder sequence_output (f32 or bf16 -- used as-is),
    mask_*: (B,S) attention masks, w: (H,E) emb_reduce_linear weight
    (transposed from torch's (E,H)), b: (E,), labels: (B,). Returns MSE loss."""
    B, S, H = seq_a.shape
    E = w.shape[1]
    dt = seq_a.dtype
    itemsize = jnp.dtype(dt).itemsize

    tb = _pick_b_tile(B) if b_tile is None else b_tile
    assert B % tb == 0, "B must be divisible by the batch tile"
    ts = _pick_s_tile(S, H, tb, itemsize) if s_tile is None else s_tile
    assert S % ts == 0, "S must be divisible by the S tile"
    num_s = S // ts

    # Small side operands only; the big (B,S,H) tensors are NOT copied/cast.
    mask_a3 = mask_a.reshape(B, 1, S).astype(dt)
    mask_b3 = mask_b.reshape(B, 1, S).astype(dt)
    cnt_a = jnp.sum(mask_a.astype(jnp.float32), axis=1).reshape(B, 1, 1)
    cnt_b = jnp.sum(mask_b.astype(jnp.float32), axis=1).reshape(B, 1, 1)
    labels3 = labels.reshape(B, 1, 1).astype(jnp.float32)

    # Pad E to a lane-dense multiple of 128: zero columns contribute nothing
    # to the L2 norm or the dot product, so the similarity is unchanged.
    E_pad = max(128, ((E + 127) // 128) * 128)
    w32 = jnp.zeros((H, E_pad), jnp.float32).at[:, :E].set(w.astype(jnp.float32))
    bias = jnp.zeros((1, E_pad), jnp.float32).at[:, :E].set(
        b.reshape(1, E).astype(jnp.float32))

    # Explicit VMEM budget (v5e default scoped limit is only 16 MiB; v7x has
    # 64 MiB physical -- keep the request comfortably below that).
    blk_bytes = (4 * tb * ts * H * itemsize          # 2 seq tensors, 2 buffers
                 + 4 * tb * ts * itemsize            # 2 mask tensors, 2 buffers
                 + 2 * (H * E_pad + E_pad) * 4       # W + bias
                 + 2 * 3 * 8 * 128 * 4               # labels/cnt tiny blocks
                 + 2 * tb * 128 * 4                  # output block
                 + 2 * max(tb, 8) * H * 4)           # f32 accumulators
    vmem_limit = int(min(max(2 * blk_bytes, 32 << 20), 48 << 20))

    kernel = functools.partial(_mse_cos_kernel, scale=float(scale))

    grid_spec = pltpu.PrefetchScalarGridSpec(
        num_scalar_prefetch=0,
        grid=(B // tb, num_s),
        in_specs=[
            pl.BlockSpec((tb, ts, H), lambda bi, si: (bi, si, 0)),   # seq_a
            pl.BlockSpec((tb, 1, ts), lambda bi, si: (bi, 0, si)),   # mask_a
            pl.BlockSpec((tb, ts, H), lambda bi, si: (bi, si, 0)),   # seq_b
            pl.BlockSpec((tb, 1, ts), lambda bi, si: (bi, 0, si)),   # mask_b
            pl.BlockSpec((tb, 1, 1), lambda bi, si: (bi, 0, 0)),     # cnt_a
            pl.BlockSpec((tb, 1, 1), lambda bi, si: (bi, 0, 0)),     # cnt_b
            pl.BlockSpec((tb, 1, 1), lambda bi, si: (bi, 0, 0)),     # labels
            pl.BlockSpec((H, E_pad), lambda bi, si: (0, 0)),         # W
            pl.BlockSpec((1, E_pad), lambda bi, si: (0, 0)),         # bias
        ],
        out_specs=pl.BlockSpec((tb, 1, 128), lambda bi, si: (bi, 0, 0)),
        scratch_shapes=[
            pltpu.VMEM((tb, 1, H), jnp.float32),   # acc_a (masked pooled sum)
            pltpu.VMEM((tb, 1, H), jnp.float32),   # acc_b
        ],
    )

    sqerr = pl.pallas_call(
        kernel,
        out_shape=jax.ShapeDtypeStruct((B, 1, 128), jnp.float32),
        grid_spec=grid_spec,
        compiler_params=pltpu.CompilerParams(
            dimension_semantics=("parallel", "arbitrary"),
            vmem_limit_bytes=vmem_limit),
    )(seq_a, mask_a3, seq_b, mask_b3, cnt_a, cnt_b, labels3, w32, bias)

    # Per-example squared errors -> mean (mse_loss, 'mean' reduction).
    return jnp.mean(sqerr[:, 0, 0])


def _reference_loss(seq_a, mask_a, seq_b, mask_b, w, b, labels, scale):
    """Pure-JAX transcription of the PyTorch 'mean'-pooling path."""
    def encode(seq, mask):
        x = seq @ w + b                                   # (B,S,E)
        m = mask[:, :, None]
        emb = jnp.sum(x * m, axis=1) / jnp.sum(m, axis=1)
        nrm = jnp.maximum(jnp.sqrt(jnp.sum(emb * emb, axis=-1, keepdims=True)),
                          1e-12)
        return emb / nrm
    sim = jnp.sum(encode(seq_a, mask_a) * encode(seq_b, mask_b), axis=-1)
    sim = sim * scale
    return jnp.mean((sim - labels) ** 2)


if __name__ == "__main__":
    B, S, H, E = 2, 8, 32, 16
    scale = 1.0

    key = jax.random.PRNGKey(0)
    k_sa, k_sb, k_w, k_b, k_lab = jax.random.split(key, 5)

    # Deterministic stand-in for BERT sequence_output for both sentences.
    seq_a = jax.random.normal(k_sa, (B, S, H), dtype=jnp.float32)
    seq_b = jax.random.normal(k_sb, (B, S, H), dtype=jnp.float32)

    # Attention masks: first few tokens valid, rest padding (pad_token_id).
    lens = jnp.array([S, S // 2], dtype=jnp.int32)
    pos = jnp.arange(S)[None, :]
    mask_a = (pos < lens[:, None]).astype(jnp.float32)
    mask_b = (pos < jnp.flip(lens)[:, None]).astype(jnp.float32)

    # emb_reduce_linear parameters (nn.Linear(hidden_size, output_emb_size)),
    # stored as [H, E] so the kernel does pooled @ W.
    w = jax.random.normal(k_w, (H, E), dtype=jnp.float32) * (1.0 / jnp.sqrt(H))
    b = jax.random.normal(k_b, (E,), dtype=jnp.float32) * 0.01

    labels = jax.random.uniform(k_lab, (B,), dtype=jnp.float32)

    loss = mse_cosine_similarity(seq_a, mask_a, seq_b, mask_b, w, b, labels,
                                 scale=scale)
    jax.block_until_ready(loss)

    ref = _reference_loss(seq_a, mask_a, seq_b, mask_b, w, b, labels, scale)
    if not bool(jnp.allclose(loss, ref, rtol=1e-3, atol=1e-5)):
        raise ValueError(f"mismatch vs reference: kernel={loss} ref={ref}")
    print("KERNEL_OK")
</pallas_src>

<mosaic_0001>
module attributes {stable_mosaic.version = 11 : i64} {
  func.func @_mse_cos_kernel(%arg0: i32, %arg1: i32, %arg2: memref<1x8x32xf32, #tpu.memory_space<vmem>>, %arg3: memref<1x1x8xf32, #tpu.memory_space<vmem>>, %arg4: memref<1x8x32xf32, #tpu.memory_space<vmem>>, %arg5: memref<1x1x8xf32, #tpu.memory_space<vmem>>, %arg6: memref<1x1x1xf32, #tpu.memory_space<vmem>>, %arg7: memref<1x1x1xf32, #tpu.memory_space<vmem>>, %arg8: memref<1x1x1xf32, #tpu.memory_space<vmem>>, %arg9: memref<32x128xf32, #tpu.memory_space<vmem>>, %arg10: memref<1x128xf32, #tpu.memory_space<vmem>>, %arg11: memref<1x1x128xf32, #tpu.memory_space<vmem>>, %arg12: memref<1x1x32xf32, #tpu.memory_space<vmem>>, %arg13: memref<1x1x32xf32, #tpu.memory_space<vmem>>) attributes {dimension_semantics = [#tpu.dimension_semantics<parallel>, #tpu.dimension_semantics<arbitrary>], iteration_bounds = array<i64: 2, 1>, scalar_prefetch = 0 : i64, scratch_operands = 2 : i64, tpu.core_type = #tpu.core_type<tc>, window_params = [{transform_indices = @transform_0, window_bounds = array<i64: 1, 8, 32>}, {transform_indices = @transform_1, window_bounds = array<i64: 1, 1, 8>}, {transform_indices = @transform_2, window_bounds = array<i64: 1, 8, 32>}, {transform_indices = @transform_3, window_bounds = array<i64: 1, 1, 8>}, {transform_indices = @transform_4, window_bounds = array<i64: 1, 1, 1>}, {transform_indices = @transform_5, window_bounds = array<i64: 1, 1, 1>}, {transform_indices = @transform_6, window_bounds = array<i64: 1, 1, 1>}, {pipeline_mode = #tpu.pipeline_mode<synchronous>, transform_indices = @transform_7, window_bounds = array<i64: 32, 128>}, {pipeline_mode = #tpu.pipeline_mode<synchronous>, transform_indices = @transform_8, window_bounds = array<i64: 1, 128>}, {transform_indices = @transform_9, window_bounds = array<i64: 1, 1, 128>}]} {
    %c0_i32 = arith.constant 0 : i32
    %0 = arith.cmpi eq, %arg1, %c0_i32 : i32
    %1 = arith.extui %0 : i1 to i32
    %c0_i32_0 = arith.constant 0 : i32
    %2 = arith.cmpi ne, %1, %c0_i32_0 : i32
    scf.if %2 {
      %cst_27 = arith.constant 0.000000e+00 : f32
      %18 = vector.broadcast %cst_27 : f32 to vector<1x1x32xf32>
      %c0_28 = arith.constant 0 : index
      %c0_29 = arith.constant 0 : index
      %c0_30 = arith.constant 0 : index
      %19 = vector.load %arg12[%c0_28, %c0_29, %c0_30] : memref<1x1x32xf32, #tpu.memory_space<vmem>>, vector<1x1x32xf32>
      tpu.vector_store %arg12[%c0_28, %c0_29, %c0_30], %18 {strides = array<i32>} : memref<1x1x32xf32, #tpu.memory_space<vmem>>, vector<1x1x32xf32>,
      %cst_31 = arith.constant 0.000000e+00 : f32
      %20 = vector.broadcast %cst_31 : f32 to vector<1x1x32xf32>
      %c0_32 = arith.constant 0 : index
      %c0_33 = arith.constant 0 : index
      %c0_34 = arith.constant 0 : index
      %21 = vector.load %arg13[%c0_32, %c0_33, %c0_34] : memref<1x1x32xf32, #tpu.memory_space<vmem>>, vector<1x1x32xf32>
      tpu.vector_store %arg13[%c0_32, %c0_33, %c0_34], %20 {strides = array<i32>} : memref<1x1x32xf32, #tpu.memory_space<vmem>>, vector<1x1x32xf32>,
    } else {
    }
    %c0 = arith.constant 0 : index
    %c0_1 = arith.constant 0 : index
    %c0_2 = arith.constant 0 : index
    %3 = vector.load %arg12[%c0, %c0_1, %c0_2] : memref<1x1x32xf32, #tpu.memory_space<vmem>>, vector<1x1x32xf32>
    %c0_3 = arith.constant 0 : index
    %c0_4 = arith.constant 0 : index
    %c0_5 = arith.constant 0 : index
    %4 = vector.load %arg3[%c0_3, %c0_4, %c0_5] : memref<1x1x8xf32, #tpu.memory_space<vmem>>, vector<1x1x8xf32>
    %c0_6 = arith.constant 0 : index
    %c0_7 = arith.constant 0 : index
    %c0_8 = arith.constant 0 : index
    %5 = vector.load %arg2[%c0_6, %c0_7, %c0_8] : memref<1x8x32xf32, #tpu.memory_space<vmem>>, vector<1x8x32xf32>
    "tpu.trace_start"() <{level = 10 : i32, message = "bos,bsh->boh"}> : () -> ()
    %cst = arith.constant dense<0.000000e+00> : vector<1x1x32xf32>
    %6 = tpu.matmul %4, %5, %cst {dimension_numbers = #tpu.dot_dimension_numbers<[2], [1], [1], [2], [0, 0, 0, 1, 1, 2], [0], [0]>} : vector<1x1x8xf32>, vector<1x8x32xf32>, vector<1x1x32xf32> -> vector<1x1x32xf32>
    "tpu.trace_stop"() : () -> ()
    %7 = arith.addf %3, %6 : vector<1x1x32xf32>
    %c0_9 = arith.constant 0 : index
    %c0_10 = arith.constant 0 : index
    %c0_11 = arith.constant 0 : index
    %8 = vector.load %arg12[%c0_9, %c0_10, %c0_11] : memref<1x1x32xf32, #tpu.memory_space<vmem>>, vector<1x1x32xf32>
    tpu.vector_store %arg12[%c0_9, %c0_10, %c0_11], %7 {strides = array<i32>} : memref<1x1x32xf32, #tpu.memory_space<vmem>>, vector<1x1x32xf32>,
    %c0_12 = arith.constant 0 : index
    %c0_13 = arith.constant 0 : index
    %c0_14 = arith.constant 0 : index
    %9 = vector.load %arg13[%c0_12, %c0_13, %c0_14] : memref<1x1x32xf32, #tpu.memory_space<vmem>>, vector<1x1x32xf32>
    %c0_15 = arith.constant 0 : index
    %c0_16 = arith.constant 0 : index
    %c0_17 = arith.constant 0 : index
    %10 = vector.load %arg5[%c0_15, %c0_16, %c0_17] : memref<1x1x8xf32, #tpu.memory_space<vmem>>, vector<1x1x8xf32>
    %c0_18 = arith.constant 0 : index
    %c0_19 = arith.constant 0 : index
    %c0_20 = arith.constant 0 : index
    %11 = vector.load %arg4[%c0_18, %c0_19, %c0_20] : memref<1x8x32xf32, #tpu.memory_space<vmem>>, vector<1x8x32xf32>
    "tpu.trace_start"() <{level = 10 : i32, message = "bos,bsh->boh"}> : () -> ()
    %cst_21 = arith.constant dense<0.000000e+00> : vector<1x1x32xf32>
    %12 = tpu.matmul %10, %11, %cst_21 {dimension_numbers = #tpu.dot_dimension_numbers<[2], [1], [1], [2], [0, 0, 0, 1, 1, 2], [0], [0]>} : vector<1x1x8xf32>, vector<1x8x32xf32>, vector<1x1x32xf32> -> vector<1x1x32xf32>
    "tpu.trace_stop"() : () -> ()
    %13 = arith.addf %9, %12 : vector<1x1x32xf32>
    %c0_22 = arith.constant 0 : index
    %c0_23 = arith.constant 0 : index
    %c0_24 = arith.constant 0 : index
    %14 = vector.load %arg13[%c0_22, %c0_23, %c0_24] : memref<1x1x32xf32, #tpu.memory_space<vmem>>, vector<1x1x32xf32>
    tpu.vector_store %arg13[%c0_22, %c0_23, %c0_24], %13 {strides = array<i32>} : memref<1x1x32xf32, #tpu.memory_space<vmem>>, vector<1x1x32xf32>,
    %c0_i32_25 = arith.constant 0 : i32
    %15 = arith.cmpi eq, %arg1, %c0_i32_25 : i32
    %16 = arith.extui %15 : i1 to i32
    %c0_i32_26 = arith.constant 0 : i32
    %17 = arith.cmpi ne, %16, %c0_i32_26 : i32
    scf.if %17 {
      %c0_27 = arith.constant 0 : index
      %c0_28 = arith.constant 0 : index
      %18 = vector.load %arg9[%c0_27, %c0_28] : memref<32x128xf32, #tpu.memory_space<vmem>>, vector<32x128xf32>
      %c0_29 = arith.constant 0 : index
      %c0_30 = arith.constant 0 : index
      %19 = vector.load %arg10[%c0_29, %c0_30] : memref<1x128xf32, #tpu.memory_space<vmem>>, vector<1x128xf32>
      %c0_31 = arith.constant 0 : index
      %c0_32 = arith.constant 0 : index
      %c0_33 = arith.constant 0 : index
      %20 = vector.load %arg12[%c0_31, %c0_32, %c0_33] : memref<1x1x32xf32, #tpu.memory_space<vmem>>, vector<1x1x32xf32>
      %21 = vector.shape_cast %20 : vector<1x1x32xf32> to vector<1x32xf32>
      %c0_34 = arith.constant 0 : index
      %c0_35 = arith.constant 0 : index
      %c0_36 = arith.constant 0 : index
      %22 = vector.load %arg6[%c0_34, %c0_35, %c0_36] : memref<1x1x1xf32, #tpu.memory_space<vmem>>, vector<1x1x1xf32>
      %23 = vector.shape_cast %22 : vector<1x1x1xf32> to vector<1x1xf32>
      %24 = vector.broadcast %23 : vector<1x1xf32> to vector<1x32xf32>
      %25 = arith.divf %21, %24 : vector<1x32xf32>
      %c0_37 = arith.constant 0 : index
      %c0_38 = arith.constant 0 : index
      %c0_39 = arith.constant 0 : index
      %26 = vector.load %arg13[%c0_37, %c0_38, %c0_39] : memref<1x1x32xf32, #tpu.memory_space<vmem>>, vector<1x1x32xf32>
      %27 = vector.shape_cast %26 : vector<1x1x32xf32> to vector<1x32xf32>
      %c0_40 = arith.constant 0 : index
      %c0_41 = arith.constant 0 : index
      %c0_42 = arith.constant 0 : index
      %28 = vector.load %arg7[%c0_40, %c0_41, %c0_42] : memref<1x1x1xf32, #tpu.memory_space<vmem>>, vector<1x1x1xf32>
      %29 = vector.shape_cast %28 : vector<1x1x1xf32> to vector<1x1xf32>
      %30 = vector.broadcast %29 : vector<1x1xf32> to vector<1x32xf32>
      %31 = arith.divf %27, %30 : vector<1x32xf32>
      %cst_43 = arith.constant dense<0.000000e+00> : vector<1x128xf32>
      %32 = tpu.matmul %25, %18, %cst_43 {dimension_numbers = #tpu.dot_dimension_numbers<[1], [0], [0], [1], [0, 0, 1, 1], [], []>} : vector<1x32xf32>, vector<32x128xf32>, vector<1x128xf32> -> vector<1x128xf32>
      %33 = arith.addf %32, %19 : vector<1x128xf32>
      %cst_44 = arith.constant dense<0.000000e+00> : vector<1x128xf32>
      %34 = tpu.matmul %31, %18, %cst_44 {dimension_numbers = #tpu.dot_dimension_numbers<[1], [0], [0], [1], [0, 0, 1, 1], [], []>} : vector<1x32xf32>, vector<32x128xf32>, vector<1x128xf32> -> vector<1x128xf32>
      %35 = arith.addf %34, %19 : vector<1x128xf32>
      %36 = arith.mulf %33, %33 : vector<1x128xf32>
      %cst_45 = arith.constant dense<0.000000e+00> : vector<1xf32>
      %37 = vector.multi_reduction <add>, %36, %cst_45 [1] : vector<1x128xf32> to vector<1xf32>
      %38 = vector.shape_cast %37 : vector<1xf32> to vector<1x1xf32>
      %cst_46 = arith.constant 1.000000e-24 : f32
      %39 = vector.broadcast %cst_46 : f32 to vector<1x1xf32>
      %40 = arith.maximumf %38, %39 : vector<1x1xf32>
      %41 = math.rsqrt %40 : vector<1x1xf32>
      %42 = arith.mulf %35, %35 : vector<1x128xf32>
      %cst_47 = arith.constant dense<0.000000e+00> : vector<1xf32>
      %43 = vector.multi_reduction <add>, %42, %cst_47 [1] : vector<1x128xf32> to vector<1xf32>
      %44 = vector.shape_cast %43 : vector<1xf32> to vector<1x1xf32>
      %cst_48 = arith.constant 1.000000e-24 : f32
      %45 = vector.broadcast %cst_48 : f32 to vector<1x1xf32>
      %46 = arith.maximumf %44, %45 : vector<1x1xf32>
      %47 = math.rsqrt %46 : vector<1x1xf32>
      %48 = vector.broadcast %41 : vector<1x1xf32> to vector<1x128xf32>
      %49 = arith.mulf %33, %48 : vector<1x128xf32>
      %50 = vector.broadcast %47 : vector<1x1xf32> to vector<1x128xf32>
      %51 = arith.mulf %35, %50 : vector<1x128xf32>
      %52 = arith.mulf %49, %51 : vector<1x128xf32>
      %cst_49 = arith.constant dense<0.000000e+00> : vector<1xf32>
      %53 = vector.multi_reduction <add>, %52, %cst_49 [1] : vector<1x128xf32> to vector<1xf32>
      %54 = vector.shape_cast %53 : vector<1xf32> to vector<1x1xf32>
      %cst_50 = arith.constant 1.000000e+00 : f32
      %55 = vector.broadcast %cst_50 : f32 to vector<1x1xf32>
      %56 = arith.mulf %54, %55 : vector<1x1xf32>
      %c0_51 = arith.constant 0 : index
      %c0_52 = arith.constant 0 : index
      %c0_53 = arith.constant 0 : index
      %57 = vector.load %arg8[%c0_51, %c0_52, %c0_53] : memref<1x1x1xf32, #tpu.memory_space<vmem>>, vector<1x1x1xf32>
      %58 = vector.shape_cast %57 : vector<1x1x1xf32> to vector<1x1xf32>
      %59 = arith.subf %56, %58 : vector<1x1xf32>
      %60 = arith.mulf %59, %59 : vector<1x1xf32>
      %61 = vector.shape_cast %60 : vector<1x1xf32> to vector<1x1x1xf32>
      %62 = vector.shape_cast %61 : vector<1x1x1xf32> to vector<1x1x1xf32>
      %63 = vector.broadcast %62 : vector<1x1x1xf32> to vector<1x1x128xf32>
      %c0_54 = arith.constant 0 : index
      %c0_55 = arith.constant 0 : index
      %c0_56 = arith.constant 0 : index
      %64 = vector.load %arg11[%c0_54, %c0_55, %c0_56] : memref<1x1x128xf32, #tpu.memory_space<vmem>>, vector<1x1x128xf32>
      tpu.vector_store %arg11[%c0_54, %c0_55, %c0_56], %63 {strides = array<i32>} : memref<1x1x128xf32, #tpu.memory_space<vmem>>, vector<1x1x128xf32>,
    } else {
    }
    return
  }
  func.func @transform_0(%arg0: i32, %arg1: i32) -> (i32, i32, i32) {
    %c0_i32 = arith.constant 0 : i32
    %c0_i32_0 = arith.constant 0 : i32
    return %arg0, %arg1, %c0_i32 : i32, i32, i32
  }
  func.func @transform_1(%arg0: i32, %arg1: i32) -> (i32, i32, i32) {
    %c0_i32 = arith.constant 0 : i32
    %c0_i32_0 = arith.constant 0 : i32
    return %arg0, %c0_i32, %arg1 : i32, i32, i32
  }
  func.func @transform_2(%arg0: i32, %arg1: i32) -> (i32, i32, i32) {
    %c0_i32 = arith.constant 0 : i32
    %c0_i32_0 = arith.constant 0 : i32
    return %arg0, %arg1, %c0_i32 : i32, i32, i32
  }
  func.func @transform_3(%arg0: i32, %arg1: i32) -> (i32, i32, i32) {
    %c0_i32 = arith.constant 0 : i32
    %c0_i32_0 = arith.constant 0 : i32
    return %arg0, %c0_i32, %arg1 : i32, i32, i32
  }
  func.func @transform_4(%arg0: i32, %arg1: i32) -> (i32, i32, i32) {
    %c0_i32 = arith.constant 0 : i32
    %c0_i32_0 = arith.constant 0 : i32
    %c0_i32_1 = arith.constant 0 : i32
    return %arg0, %c0_i32, %c0_i32_0 : i32, i32, i32
  }
  func.func @transform_5(%arg0: i32, %arg1: i32) -> (i32, i32, i32) {
    %c0_i32 = arith.constant 0 : i32
    %c0_i32_0 = arith.constant 0 : i32
    %c0_i32_1 = arith.constant 0 : i32
    return %arg0, %c0_i32, %c0_i32_0 : i32, i32, i32
  }
  func.func @transform_6(%arg0: i32, %arg1: i32) -> (i32, i32, i32) {
    %c0_i32 = arith.constant 0 : i32
    %c0_i32_0 = arith.constant 0 : i32
    %c0_i32_1 = arith.constant 0 : i32
    return %arg0, %c0_i32, %c0_i32_0 : i32, i32, i32
  }
  func.func @transform_7(%arg0: i32, %arg1: i32) -> (i32, i32) {
    %c0_i32 = arith.constant 0 : i32
    %c0_i32_0 = arith.constant 0 : i32
    %c0_i32_1 = arith.constant 0 : i32
    return %c0_i32, %c0_i32_0 : i32, i32
  }
  func.func @transform_8(%arg0: i32, %arg1: i32) -> (i32, i32) {
    %c0_i32 = arith.constant 0 : i32
    %c0_i32_0 = arith.constant 0 : i32
    %c0_i32_1 = arith.constant 0 : i32
    return %c0_i32, %c0_i32_0 : i32, i32
  }
  func.func @transform_9(%arg0: i32, %arg1: i32) -> (i32, i32, i32) {
    %c0_i32 = arith.constant 0 : i32
    %c0_i32_0 = arith.constant 0 : i32
    %c0_i32_1 = arith.constant 0 : i32
    return %arg0, %c0_i32, %c0_i32_0 : i32, i32, i32
  }
}

</mosaic_0001>

<llo_original>
// kernel: tpu_custom_call.1
$region0: #{tpu_custom_call.1}
  #allocation0 [shape = 'u32[]', space=smem, size = 0x4, offset = 0x4, fixed_abs, tag = 'smem constant byte address 0x4 - core index']
  #allocation1 [shape = 'u32[144,128]{1,0:T(1,128)}', space=vmem, size = 0x12000, scoped, tag = 'internal scratch']
  #allocation2 [shape = 'f32[1,1,32]{2,1,0:T(1,128)}', space=vmem, size = 0x200, scoped, tag = 'scratch operand']
  #allocation3 [shape = 'f32[1,1,32]{2,1,0:T(1,128)}', space=vmem, size = 0x200, scoped, tag = 'scratch operand']
  %s0 = inlined_call_operand.hbm [shape: f32[2,8,32], index: 0, kind: input, shape index: {}]
  %s1 = inlined_call_operand.vmem [shape: f32[2,1,8], index: 1, kind: input, shape index: {}]
  %s2 = inlined_call_operand.hbm [shape: f32[2,8,32], index: 2, kind: input, shape index: {}]
  %s3 = inlined_call_operand.vmem [shape: f32[2,1,8], index: 3, kind: input, shape index: {}]
  %s4 = inlined_call_operand.vmem [shape: f32[2,1,1], index: 4, kind: input, shape index: {}]
  %s5 = inlined_call_operand.vmem [shape: f32[2,1,1], index: 5, kind: input, shape index: {}]
  %s6 = inlined_call_operand.vmem [shape: f32[2,1,1], index: 6, kind: input, shape index: {}]
  %s7 = inlined_call_operand.vmem [shape: f32[32,128], index: 7, kind: input, shape index: {}]
  %s8 = inlined_call_operand.vmem [shape: f32[1,128], index: 8, kind: input, shape index: {}]
  %s9 = inlined_call_operand.hbm [shape: f32[2,1,128], index: 9, kind: output, shape index: {}]
  %s10 = sld [smem:[#allocation0]]
  $region85: #{tpu_custom_call.1} parent=0
    _
  %s12 = ssub.s32 1, %s10
  %s13 = scalar_select 0, %s12, %s10
  $region1: #{tpu_custom_call.1} parent=0
    #allocation4 [shape = 'u8[8192]{0}', space=vmem, size = 0x2000, scoped, tag = 'input window, operand 0']
    #allocation5 [shape = 's32[2]{0}', space=sflag, size = 0x8, scoped, tag = 'scoped memory for tpu_custom_call.1']
    #allocation6 [shape = 's32[2]{0}', space=sflag, size = 0x8, scoped, tag = 'scoped memory for tpu_custom_call.1']
    #allocation7 [shape = 'u8[8192]{0}', space=vmem, size = 0x2000, scoped, tag = 'input window, operand 2']
    #allocation8 [shape = 's32[2]{0}', space=sflag, size = 0x8, scoped, tag = 'scoped memory for tpu_custom_call.1']
    #allocation9 [shape = 'u8[1024]{0}', space=vmem, size = 0x400, scoped, tag = 'output window, operand 0']
    %14 = vsyncpa [#allocation5], 0
    %s15 = scalar_lea.sflag [#allocation5], 1
    %16 = vsyncpa %s15, 0
    %17 = vsyncpa [#allocation8], 0
    %s18 = scalar_lea.sflag [#allocation8], 1
    %19 = vsyncpa %s18, 0
    %20 = vsyncpa [#allocation6], 0
    %s21 = scalar_lea.sflag [#allocation6], 1
    %22 = vsyncpa %s21, 0
    loop: start=0, step=1, limit=4
    $region2: #{tpu_custom_call.1} parent=1 // loop_pre_header
      _
    $region3: #{tpu_custom_call.1} parent=1 // loop_header
      %s24 = sphi 0, %s28
      %p25 = scmp.ge.s32.totalorder %s24, 4
      %s31 = sphi 0, %s43
      %s32 = sphi 0, %s39
      %s33 = sphi 0, %s31
      %s34 = sphi 0, %s32
      %s35 = sphi 0, %s33
      %s36 = sphi 0, %s34
      %s48 = sphi 0, %s50
      %s51 = sphi 0, %s48
      %s52 = sphi 0, %s51
      %s68 = sphi 0, %s52
      %s76 = sphi 0, %s78
      %s79 = sphi 0, %s76
      %s80 = sphi 0, %s79
      %s96 = sphi 0, %s80
      %s104 = sphi 0, %s106
      %s107 = sphi 0, %s104
      %s108 = sphi 0, %s107
      %s124 = sphi 0, %s108
      %s132 = sphi 0, %s134
      %s135 = sphi 0, %s132
      %s136 = sphi 0, %s135
      %s152 = sphi 0, %s136
      %s158 = sphi 0, %s160
      %s161 = sphi 0, %s158
      %s162 = sphi 0, %s161
      %s178 = sphi 0, %s162
      %s184 = sphi 0, %s186
      %s187 = sphi 0, %s184
      %s188 = sphi 0, %s187
      %s204 = sphi 0, %s188
      %s210 = sphi 0, %s212
      %s213 = sphi 0, %s210
      %s214 = sphi 0, %s213
      %s230 = sphi 0, %s214
      %s234 = sphi 0, %s234
      %s236 = sphi 0, %s234
      %s237 = sphi 0, %s236
      %s251 = sphi 0, %s237
      %s255 = sphi 0, %s255
      %s257 = sphi 0, %s255
      %s258 = sphi 0, %s257
      %s272 = sphi 0, %s258
      %s278 = sphi 0, %s280
      %s281 = sphi 0, %s278
      %s282 = sphi 0, %s281
      %s298 = sphi 0, %s282
    $region4: #{tpu_custom_call.1} parent=1 // loop_header_branch
      %27 = sbr.rel (%p25) target = $region8
    $region5: #{tpu_custom_call.1} parent=1 // loop_body
      %s29 = ssub.s32 %s24, 1
      %s30 = ssub.s32 %s24, 2
      %s37 = sadd.s32 1, %s32
      %p38 = scmp.ge.s32.totalorder %s37, 1
      %s39 = scalar_select %p38, 0, %s37
      %s40 = sadd.s32 1, %s31
      %s41 = scalar_select %p38, %s40, %s31
      %p42 = scmp.ge.s32.totalorder %s41, 2
      %s43 = scalar_select %p42, 0, %s41
      %s44 = ssub.s32 %s31, %s43
      %s45 = ssub.s32 %s32, %s39
      %s46 = sor.u32 %s44, %s45
      %p47 = scmp.eq.s32.totalorder %s46, 0
      %s49 = sadd.s32 %s48, 1
      %s50 = scalar_select %p47, %s48, %s49
      %p53 = pneg %p47
      %p54 = scmp.eq.s32.totalorder %s24, 1
      %p55 = por %p53, %p54
      %p56 = scmp.ne.s32.totalorder %s48, %s51
      %p57 = scmp.eq.s32.totalorder %s24, 0
      %p58 = por %p56, %p57
      %p59 = scmp.ne.s32.totalorder %s48, %s51
      %p60 = scmp.eq.s32.totalorder %s29, 1
      %p61 = por %p59, %p60
      %p62 = scmp.ne.s32.totalorder %s51, %s52
      %p63 = scmp.eq.s32.totalorder %s29, 0
      %p64 = por %p62, %p63
      %p65 = scmp.ne.s32.totalorder %s51, %s52
      %p66 = scmp.eq.s32.totalorder %s30, 1
      %p67 = por %p65, %p66
      %p69 = scmp.ne.s32.totalorder %s52, %s68
      %p70 = scmp.eq.s32.totalorder %s30, 0
      %p71 = por %p69, %p70
      %s72 = ssub.s32 %s31, %s43
      %s73 = ssub.s32 %s32, %s39
      %s74 = sor.u32 %s72, %s73
      %p75 = scmp.eq.s32.totalorder %s74, 0
      %s77 = sadd.s32 %s76, 1
      %s78 = scalar_select %p75, %s76, %s77
      %p81 = pneg %p75
      %p82 = scmp.eq.s32.totalorder %s24, 1
      %p83 = por %p81, %p82
      %p84 = scmp.ne.s32.totalorder %s76, %s79
      %p85 = scmp.eq.s32.totalorder %s24, 0
      %p86 = por %p84, %p85
      %p87 = scmp.ne.s32.totalorder %s76, %s79
      %p88 = scmp.eq.s32.totalorder %s29, 1
      %p89 = por %p87, %p88
      %p90 = scmp.ne.s32.totalorder %s79, %s80
      %p91 = scmp.eq.s32.totalorder %s29, 0
      %p92 = por %p90, %p91
      %p93 = scmp.ne.s32.totalorder %s79, %s80
      %p94 = scmp.eq.s32.totalorder %s30, 1
      %p95 = por %p93, %p94
      %p97 = scmp.ne.s32.totalorder %s80, %s96
      %p98 = scmp.eq.s32.totalorder %s30, 0
      %p99 = por %p97, %p98
      %s100 = ssub.s32 %s31, %s43
      %s101 = ssub.s32 %s32, %s39
      %s102 = sor.u32 %s100, %s101
      %p103 = scmp.eq.s32.totalorder %s102, 0
      %s105 = sadd.s32 %s104, 1
      %s106 = scalar_select %p103, %s104, %s105
      %p109 = pneg %p103
      %p110 = scmp.eq.s32.totalorder %s24, 1
      %p111 = por %p109, %p110
      %p112 = scmp.ne.s32.totalorder %s104, %s107
      %p113 = scmp.eq.s32.totalorder %s24, 0
      %p114 = por %p112, %p113
      %p115 = scmp.ne.s32.totalorder %s104, %s107
      %p116 = scmp.eq.s32.totalorder %s29, 1
      %p117 = por %p115, %p116
      %p118 = scmp.ne.s32.totalorder %s107, %s108
      %p119 = scmp.eq.s32.totalorder %s29, 0
      %p120 = por %p118, %p119
      %p121 = scmp.ne.s32.totalorder %s107, %s108
      %p122 = scmp.eq.s32.totalorder %s30, 1
      %p123 = por %p121, %p122
      %p125 = scmp.ne.s32.totalorder %s108, %s124
      %p126 = scmp.eq.s32.totalorder %s30, 0
      %p127 = por %p125, %p126
      %s128 = ssub.s32 %s31, %s43
      %s129 = ssub.s32 %s32, %s39
      %s130 = sor.u32 %s128, %s129
      %p131 = scmp.eq.s32.totalorder %s130, 0
      %s133 = sadd.s32 %s132, 1
      %s134 = scalar_select %p131, %s132, %s133
      %p137 = pneg %p131
      %p138 = scmp.eq.s32.totalorder %s24, 1
      %p139 = por %p137, %p138
      %p140 = scmp.ne.s32.totalorder %s132, %s135
      %p141 = scmp.eq.s32.totalorder %s24, 0
      %p142 = por %p140, %p141
      %p143 = scmp.ne.s32.totalorder %s132, %s135
      %p144 = scmp.eq.s32.totalorder %s29, 1
      %p145 = por %p143, %p144
      %p146 = scmp.ne.s32.totalorder %s135, %s136
      %p147 = scmp.eq.s32.totalorder %s29, 0
      %p148 = por %p146, %p147
      %p149 = scmp.ne.s32.totalorder %s135, %s136
      %p150 = scmp.eq.s32.totalorder %s30, 1
      %p151 = por %p149, %p150
      %p153 = scmp.ne.s32.totalorder %s136, %s152
      %p154 = scmp.eq.s32.totalorder %s30, 0
      %p155 = por %p153, %p154
      %s156 = ssub.s32 %s31, %s43
      %p157 = scmp.eq.s32.totalorder %s156, 0
      %s159 = sadd.s32 %s158, 1
      %s160 = scalar_select %p157, %s158, %s159
      %p163 = pneg %p157
      %p164 = scmp.eq.s32.totalorder %s24, 1
      %p165 = por %p163, %p164
      %p166 = scmp.ne.s32.totalorder %s158, %s161
      %p167 = scmp.eq.s32.totalorder %s24, 0
      %p168 = por %p166, %p167
      %p169 = scmp.ne.s32.totalorder %s158, %s161
      %p170 = scmp.eq.s32.totalorder %s29, 1
      %p171 = por %p169, %p170
      %p172 = scmp.ne.s32.totalorder %s161, %s162
      %p173 = scmp.eq.s32.totalorder %s29, 0
      %p174 = por %p172, %p173
      %p175 = scmp.ne.s32.totalorder %s161, %s162
      %p176 = scmp.eq.s32.totalorder %s30, 1
      %p177 = por %p175, %p176
      %p179 = scmp.ne.s32.totalorder %s162, %s178
      %p180 = scmp.eq.s32.totalorder %s30, 0
      %p181 = por %p179, %p180
      %s182 = ssub.s32 %s31, %s43
      %p183 = scmp.eq.s32.totalorder %s182, 0
      %s185 = sadd.s32 %s184, 1
      %s186 = scalar_select %p183, %s184, %s185
      %p189 = pneg %p183
      %p190 = scmp.eq.s32.totalorder %s24, 1
      %p191 = por %p189, %p190
      %p192 = scmp.ne.s32.totalorder %s184, %s187
      %p193 = scmp.eq.s32.totalorder %s24, 0
      %p194 = por %p192, %p193
      %p195 = scmp.ne.s32.totalorder %s184, %s187
      %p196 = scmp.eq.s32.totalorder %s29, 1
      %p197 = por %p195, %p196
      %p198 = scmp.ne.s32.totalorder %s187, %s188
      %p199 = scmp.eq.s32.totalorder %s29, 0
      %p200 = por %p198, %p199
      %p201 = scmp.ne.s32.totalorder %s187, %s188
      %p202 = scmp.eq.s32.totalorder %s30, 1
      %p203 = por %p201, %p202
      %p205 = scmp.ne.s32.totalorder %s188, %s204
      %p206 = scmp.eq.s32.totalorder %s30, 0
      %p207 = por %p205, %p206
      %s208 = ssub.s32 %s31, %s43
      %p209 = scmp.eq.s32.totalorder %s208, 0
      %s211 = sadd.s32 %s210, 1
      %s212 = scalar_select %p209, %s210, %s211
      %p215 = pneg %p209
      %p216 = scmp.eq.s32.totalorder %s24, 1
      %p217 = por %p215, %p216
      %p218 = scmp.ne.s32.totalorder %s210, %s213
      %p219 = scmp.eq.s32.totalorder %s24, 0
      %p220 = por %p218, %p219
      %p221 = scmp.ne.s32.totalorder %s210, %s213
      %p222 = scmp.eq.s32.totalorder %s29, 1
      %p223 = por %p221, %p222
      %p224 = scmp.ne.s32.totalorder %s213, %s214
      %p225 = scmp.eq.s32.totalorder %s29, 0
      %p226 = por %p224, %p225
      %p227 = scmp.ne.s32.totalorder %s213, %s214
      %p228 = scmp.eq.s32.totalorder %s30, 1
      %p229 = por %p227, %p228
      %p231 = scmp.ne.s32.totalorder %s214, %s230
      %p232 = scmp.eq.s32.totalorder %s30, 0
      %p233 = por %p231, %p232
      %s235 = sadd.s32 %s234, 1
      %p238 = scmp.eq.s32.totalorder %s24, 1
      %p239 = scmp.ne.s32.totalorder %s234, %s236
      %p240 = scmp.eq.s32.totalorder %s24, 0
      %p241 = por %p239, %p240
      %p242 = scmp.ne.s32.totalorder %s234, %s236
      %p243 = scmp.eq.s32.totalorder %s29, 1
      %p244 = por %p242, %p243
      %p245 = scmp.ne.s32.totalorder %s236, %s237
      %p246 = scmp.eq.s32.totalorder %s29, 0
      %p247 = por %p245, %p246
      %p248 = scmp.ne.s32.totalorder %s236, %s237
      %p249 = scmp.eq.s32.totalorder %s30, 1
      %p250 = por %p248, %p249
      %p252 = scmp.ne.s32.totalorder %s237, %s251
      %p253 = scmp.eq.s32.totalorder %s30, 0
      %p254 = por %p252, %p253
      %s256 = sadd.s32 %s255, 1
      %p259 = scmp.eq.s32.totalorder %s24, 1
      %p260 = scmp.ne.s32.totalorder %s255, %s257
      %p261 = scmp.eq.s32.totalorder %s24, 0
      %p262 = por %p260, %p261
      %p263 = scmp.ne.s32.totalorder %s255, %s257
      %p264 = scmp.eq.s32.totalorder %s29, 1
      %p265 = por %p263, %p264
      %p266 = scmp.ne.s32.totalorder %s257, %s258
      %p267 = scmp.eq.s32.totalorder %s29, 0
      %p268 = por %p266, %p267
      %p269 = scmp.ne.s32.totalorder %s257, %s258
      %p270 = scmp.eq.s32.totalorder %s30, 1
      %p271 = por %p269, %p270
      %p273 = scmp.ne.s32.totalorder %s258, %s272
      %p274 = scmp.eq.s32.totalorder %s30, 0
      %p275 = por %p273, %p274
      %s276 = ssub.s32 %s31, %s43
      %p277 = scmp.eq.s32.totalorder %s276, 0
      %s279 = sadd.s32 %s278, 1
      %s280 = scalar_select %p277, %s278, %s279
      %p283 = pneg %p277
      %p284 = scmp.eq.s32.totalorder %s24, 1
      %p285 = por %p283, %p284
      %p286 = scmp.ne.s32.totalorder %s278, %s281
      %p287 = scmp.eq.s32.totalorder %s24, 0
      %p288 = por %p286, %p287
      %p289 = scmp.ne.s32.totalorder %s278, %s281
      %p290 = scmp.eq.s32.totalorder %s29, 1
      %p291 = por %p289, %p290
      %p292 = scmp.ne.s32.totalorder %s281, %s282
      %p293 = scmp.eq.s32.totalorder %s29, 0
      %p294 = por %p292, %p293
      %p295 = scmp.ne.s32.totalorder %s281, %s282
      %p296 = scmp.eq.s32.totalorder %s30, 1
      %p297 = por %p295, %p296
      %p299 = scmp.ne.s32.totalorder %s282, %s298
      %p300 = scmp.eq.s32.totalorder %s30, 0
      %p301 = por %p299, %p300
      %p302 = scmp.le.s32.totalorder 1, %s24
      %p303 = scmp.lt.s32.totalorder %s24, 3
      %p304 = pnand %p302, %p303
      %p305 = pneg %p304
      // Predicated region
      $region9: #{tpu_custom_call.1} parent=5 // pred_check
        _
      $region10: #{tpu_custom_call.1} parent=5 // pred_check_branch
        %307 = sbr.rel (%p304) target = $region12
      $region11: #{tpu_custom_call.1} parent=5 // pred_region
        %s308 = ssub.s32 %s24, 1
        // Predicated region
        $region13: #{tpu_custom_call.1} parent=11 // pred_check
          %p309 = pneg %p247
        $region14: #{tpu_custom_call.1} parent=11 // pred_check_branch
          %311 = sbr.rel (%p309) target = $region16
        $region15: #{tpu_custom_call.1} parent=11 // pred_region
          _
        $region16: #{tpu_custom_call.1} parent=11 // pred_fallthru
          _
        // Predicated region
        $region17: #{tpu_custom_call.1} parent=11 // pred_check
          %p312 = pneg %p268
        $region18: #{tpu_custom_call.1} parent=11 // pred_check_branch
          %314 = sbr.rel (%p312) target = $region20
        $region19: #{tpu_custom_call.1} parent=11 // pred_region
          _
        $region20: #{tpu_custom_call.1} parent=11 // pred_fallthru
          _
      $region12: #{tpu_custom_call.1} parent=5 // pred_fallthru
        _
      %p315 = scmp.lt.s32.totalorder %s24, 2
      // Predicated region
      $region21: #{tpu_custom_call.1} parent=5 // pred_check
        %p316 = pneg %p315
      $region22: #{tpu_custom_call.1} parent=5 // pred_check_branch
        %318 = sbr.rel (%p316) target = $region24
      $region23: #{tpu_custom_call.1} parent=5 // pred_region
        // Predicated region
        $region25: #{tpu_custom_call.1} parent=23 // pred_check
          %p319 = pneg %p58
        $region26: #{tpu_custom_call.1} parent=23 // pred_check_branch
          %321 = sbr.rel (%p319) target = $region28
        $region27: #{tpu_custom_call.1} parent=23 // pred_region
          %s322 = sand.u32 %s48, 1
          %s323 = scalar_lea.sflag [#allocation5], %s322
          %s324 = sand.u32 %s48, 1
          %s325 = smul.addr %s324, 8
          %s326 = scalar_lea.vmem [#allocation4], %s325
          %s328 = ssub.s32 128, 128
          %329 = vsyncadd %s323, %s328
          %s330 = sadd.s32 %s32, %s31
          %s331 = smul.addr %s330, 128
          %s332 = scalar_lea.hbm %s0, %s331
          %s334 = sshll.u32 %s326, 4
          %s335 = int_to_ptr.vmem [resolvable:$true] %s334
          %337 = dma.hbm_to_vmem [thread:$0]  %s332, 128, %s335, %s323
        $region28: #{tpu_custom_call.1} parent=23 // pred_fallthru
          _
        // Predicated region
        $region29: #{tpu_custom_call.1} parent=23 // pred_check
          %p338 = pneg %p86
        $region30: #{tpu_custom_call.1} parent=23 // pred_check_branch
          %340 = sbr.rel (%p338) target = $region32
        $region31: #{tpu_custom_call.1} parent=23 // pred_region
          %p341 = scmp.lt.s32.totalorder %s31, 1
          %s342 = scalar_select %p341, %s31, 1
          %p343 = scmp.lt.s32.totalorder %s32, 0
          %s344 = scalar_select %p343, %s32, 0
          %s345 = sadd.s32 %s344, %s342
          %s346 = scalar_lea.vmem %s1, %s345
        $region32: #{tpu_custom_call.1} parent=23 // pred_fallthru
          _
        // Predicated region
        $region33: #{tpu_custom_call.1} parent=23 // pred_check
          %p347 = pneg %p114
        $region34: #{tpu_custom_call.1} parent=23 // pred_check_branch
          %349 = sbr.rel (%p347) target = $region36
        $region35: #{tpu_custom_call.1} parent=23 // pred_region
          %s350 = sand.u32 %s104, 1
          %s351 = scalar_lea.sflag [#allocation8], %s350
          %s352 = sand.u32 %s104, 1
          %s353 = smul.addr %s352, 8
          %s354 = scalar_lea.vmem [#allocation7], %s353
          %s356 = ssub.s32 128, 128
          %357 = vsyncadd %s351, %s356
          %s358 = sadd.s32 %s32, %s31
          %s359 = smul.addr %s358, 128
          %s360 = scalar_lea.hbm %s2, %s359
          %s362 = sshll.u32 %s354, 4
          %s363 = int_to_ptr.vmem [resolvable:$true] %s362
          %365 = dma.hbm_to_vmem [thread:$0]  %s360, 128, %s363, %s351
        $region36: #{tpu_custom_call.1} parent=23 // pred_fallthru
          _
        // Predicated region
        $region37: #{tpu_custom_call.1} parent=23 // pred_check
          %p366 = pneg %p142
        $region38: #{tpu_custom_call.1} parent=23 // pred_check_branch
          %368 = sbr.rel (%p366) target = $region40
        $region39: #{tpu_custom_call.1} parent=23 // pred_region
          %p369 = scmp.lt.s32.totalorder %s31, 1
          %s370 = scalar_select %p369, %s31, 1
          %p371 = scmp.lt.s32.totalorder %s32, 0
          %s372 = scalar_select %p371, %s32, 0
          %s373 = sadd.s32 %s372, %s370
          %s374 = scalar_lea.vmem %s3, %s373
        $region40: #{tpu_custom_call.1} parent=23 // pred_fallthru
          _
        // Predicated region
        $region41: #{tpu_custom_call.1} parent=23 // pred_check
          %p375 = pneg %p168
        $region42: #{tpu_custom_call.1} parent=23 // pred_check_branch
          %377 = sbr.rel (%p375) target = $region44
        $region43: #{tpu_custom_call.1} parent=23 // pred_region
          %p378 = scmp.lt.s32.totalorder %s31, 1
          %s379 = scalar_select %p378, %s31, 1
          %s380 = scalar_lea.vmem %s4, %s379
        $region44: #{tpu_custom_call.1} parent=23 // pred_fallthru
          _
        // Predicated region
        $region45: #{tpu_custom_call.1} parent=23 // pred_check
          %p381 = pneg %p194
        $region46: #{tpu_custom_call.1} parent=23 // pred_check_branch
          %383 = sbr.rel (%p381) target = $region48
        $region47: #{tpu_custom_call.1} parent=23 // pred_region
          %p384 = scmp.lt.s32.totalorder %s31, 1
          %s385 = scalar_select %p384, %s31, 1
          %s386 = scalar_lea.vmem %s5, %s385
        $region48: #{tpu_custom_call.1} parent=23 // pred_fallthru
          _
        // Predicated region
        $region49: #{tpu_custom_call.1} parent=23 // pred_check
          %p387 = pneg %p220
        $region50: #{tpu_custom_call.1} parent=23 // pred_check_branch
          %389 = sbr.rel (%p387) target = $region52
        $region51: #{tpu_custom_call.1} parent=23 // pred_region
          %p390 = scmp.lt.s32.totalorder %s31, 1
          %s391 = scalar_select %p390, %s31, 1
          %s392 = scalar_lea.vmem %s6, %s391
        $region52: #{tpu_custom_call.1} parent=23 // pred_fallthru
          _
      $region24: #{tpu_custom_call.1} parent=5 // pred_fallthru
        _
      %p393 = scmp.le.s32.totalorder 1, %s24
      %p394 = scmp.lt.s32.totalorder %s24, 3
      %p395 = pnand %p393, %p394
      %p396 = pneg %p395
      // Predicated region
      $region53: #{tpu_custom_call.1} parent=5 // pred_check
        _
      $region54: #{tpu_custom_call.1} parent=5 // pred_check_branch
        %398 = sbr.rel (%p395) target = $region56
      $region55: #{tpu_custom_call.1} parent=5 // pred_region
        %s399 = ssub.s32 %s24, 1
        %s400 = sand.u32 %s51, 1
        %s401 = scalar_lea.sflag [#allocation5], %s400
        %s402 = sand.u32 %s51, 1
        %s403 = smul.addr %s402, 8
        %s404 = scalar_lea.vmem [#allocation4], %s403
        // Predicated region
        $region57: #{tpu_custom_call.1} parent=55 // pred_check
          %p405 = pneg %p64
        $region58: #{tpu_custom_call.1} parent=55 // pred_check_branch
          %407 = sbr.rel (%p405) target = $region60
        $region59: #{tpu_custom_call.1} parent=55 // pred_region
          %408 = dma.done %s401, 128
        $region60: #{tpu_custom_call.1} parent=55 // pred_fallthru
          _
        %s409 = sand.u32 %s107, 1
        %s410 = scalar_lea.sflag [#allocation8], %s409
        %s411 = sand.u32 %s107, 1
        %s412 = smul.addr %s411, 8
        %s413 = scalar_lea.vmem [#allocation7], %s412
        // Predicated region
        $region61: #{tpu_custom_call.1} parent=55 // pred_check
          %p414 = pneg %p120
        $region62: #{tpu_custom_call.1} parent=55 // pred_check_branch
          %416 = sbr.rel (%p414) target = $region64
        $region63: #{tpu_custom_call.1} parent=55 // pred_region
          %417 = dma.done %s410, 128
        $region64: #{tpu_custom_call.1} parent=55 // pred_fallthru
          _
        %s418 = sand.u32 %s51, 1
        %s419 = scalar_lea.sflag [#allocation5], %s418
        %s420 = sand.u32 %s51, 1
        %s421 = smul.addr %s420, 8
        %s422 = scalar_lea.vmem [#allocation4], %s421
        %p423 = pneg %p64
        %p424 = pneg %p61
        %p425 = scmp.lt.s32.totalorder %s33, 1
        %s426 = scalar_select %p425, %s33, 1
        %p427 = scmp.lt.s32.totalorder %s34, 0
        %s428 = scalar_select %p427, %s34, 0
        %s429 = sadd.s32 %s428, %s426
        %s430 = scalar_lea.vmem %s1, %s429
        %p431 = pneg %p92
        %p432 = pneg %p89
        %s433 = sand.u32 %s107, 1
        %s434 = scalar_lea.sflag [#allocation8], %s433
        %s435 = sand.u32 %s107, 1
        %s436 = smul.addr %s435, 8
        %s437 = scalar_lea.vmem [#allocation7], %s436
        %p438 = pneg %p120
        %p439 = pneg %p117
        %p440 = scmp.lt.s32.totalorder %s33, 1
        %s441 = scalar_select %p440, %s33, 1
        %p442 = scmp.lt.s32.totalorder %s34, 0
        %s443 = scalar_select %p442, %s34, 0
        %s444 = sadd.s32 %s443, %s441
        %s445 = scalar_lea.vmem %s3, %s444
        %p446 = pneg %p148
        %p447 = pneg %p145
        %p448 = scmp.lt.s32.totalorder %s33, 1
        %s449 = scalar_select %p448, %s33, 1
        %s450 = scalar_lea.vmem %s4, %s449
        %p451 = pneg %p174
        %p452 = pneg %p171
        %p453 = scmp.lt.s32.totalorder %s33, 1
        %s454 = scalar_select %p453, %s33, 1
        %s455 = scalar_lea.vmem %s5, %s454
        %p456 = pneg %p200
        %p457 = pneg %p197
        %p458 = scmp.lt.s32.totalorder %s33, 1
        %s459 = scalar_select %p458, %s33, 1
        %s460 = scalar_lea.vmem %s6, %s459
        %p461 = pneg %p226
        %p462 = pneg %p223
        %p463 = pneg %p247
        %p464 = pneg %p244
        %p465 = pneg %p268
        %p466 = pneg %p265
        %p467 = pneg %p294
        %p468 = pneg %p291
        %s469 = sand.u32 %s281, 1
        %s470 = scalar_lea.sflag [#allocation6], %s469
        %s471 = sand.u32 %s281, 1
        %s472 = scalar_lea.vmem [#allocation9], %s471
        %p473 = scmp.lt.s32.totalorder %s33, 1
        %s474 = scalar_select %p473, %s33, 1
        %p475 = scmp.lt.s32.totalorder %s34, 0
        %s476 = scalar_select %p475, %s34, 0
        %s477 = sadd.s32 %s476, %s474
        %s478 = scalar_lea.vmem %s1, %s477
        %p479 = scmp.lt.s32.totalorder %s33, 1
        %s480 = scalar_select %p479, %s33, 1
        %p481 = scmp.lt.s32.totalorder %s34, 0
        %s482 = scalar_select %p481, %s34, 0
        %s483 = sadd.s32 %s482, %s480
        %s484 = scalar_lea.vmem %s3, %s483
        %p485 = scmp.lt.s32.totalorder %s33, 1
        %s486 = scalar_select %p485, %s33, 1
        %s487 = scalar_lea.vmem %s4, %s486
        %p488 = scmp.lt.s32.totalorder %s33, 1
        %s489 = scalar_select %p488, %s33, 1
        %s490 = scalar_lea.vmem %s5, %s489
        %p491 = scmp.lt.s32.totalorder %s33, 1
        %s492 = scalar_select %p491, %s33, 1
        %s493 = scalar_lea.vmem %s6, %s492
        %p494 = scmp.eq.s32.totalorder %s34, 0
        // Predicated region
        $region65: #{tpu_custom_call.1} parent=55 // pred_check
          %p495 = pneg %p494
        $region66: #{tpu_custom_call.1} parent=55 // pred_check_branch
          %497 = sbr.rel (%p495) target = $region68
        $region67: #{tpu_custom_call.1} parent=55 // pred_region
          %vm498 = vcmask 253952
          %499 = vst.msk [vmem:[#allocation2] sm:$0x1] %vm498, 0.0
          %500 = vst.msk [vmem:[#allocation3] sm:$0x1] %vm498, 0.0
        $region68: #{tpu_custom_call.1} parent=55 // pred_fallthru
          _
        %v501 = vld [vmem:[#allocation2] sm:$0x1]
        %v502 = vld [vmem:[%s478] sm:$0x1]
        %v503 = vld [vmem:[%s404] sm:$0xff]
        %vm504 = vcmask 64512
        %v506 = vsel %vm504, %v502, 0
        %508 = vmatprep.subr.mxu0 0.0
        %509 = vmatpush1.msra.mxu0 %v503
        %510 = vmatprep.subr.mxu0 0.0
        %511 = vmatpush1.msra.mxu0 0.0
        %512 = vmatprep.subr.mxu0 0.0
        %513 = vmatpush1.msra.mxu0 0.0
        %514 = vmatprep.subr.mxu0 0.0
        %515 = vmatpush1.msra.mxu0 0.0
        %516 = vmatprep.subr.mxu0 0.0
        %517 = vmatpush1.msra.mxu0 0.0
        %518 = vmatprep.subr.mxu0 0.0
        %519 = vmatpush1.msra.mxu0 0.0
        %520 = vmatprep.subr.mxu0 0.0
        %521 = vmatpush1.msra.mxu0 0.0
        %522 = vmatprep.subr.mxu0 0.0
        %523 = vmatpush1.msra.mxu0 0.0
        %524 = vmatprep.subr.mxu0 0.0
        %525 = vmatpush1.msra.mxu0 0.0
        %526 = vmatprep.subr.mxu0 0.0
        %527 = vmatpush1.msra.mxu0 0.0
        %528 = vmatprep.subr.mxu0 0.0
        %529 = vmatpush1.msra.mxu0 0.0
        %530 = vmatprep.subr.mxu0 0.0
        %531 = vmatpush1.msra.mxu0 0.0
        %532 = vmatprep.subr.mxu0 0.0
        %533 = vmatpush1.msra.mxu0 0.0
        %534 = vmatprep.subr.mxu0 0.0
        %535 = vmatpush1.msra.mxu0 0.0
        %536 = vmatprep.subr.mxu0 0.0
        %537 = vmatpush1.msra.mxu0 0.0
        %538 = vmatprep.subr.mxu0 0.0
        %539 = vmatpush1.msra.mxu0 0.0
        %540 = vmatprep.subr.mxu0 0.0
        %541 = vmatpush1.msra.mxu0 0.0
        %542 = vmatprep.subr.mxu0 0.0
        %543 = vmatpush1.msra.mxu0 0.0
        %544 = vmatprep.subr.mxu0 0.0
        %545 = vmatpush1.msra.mxu0 0.0
        %546 = vmatprep.subr.mxu0 0.0
        %547 = vmatpush1.msra.mxu0 0.0
        %548 = vmatprep.subr.mxu0 0.0
        %549 = vmatpush1.msra.mxu0 0.0
        %550 = vmatprep.subr.mxu0 0.0
        %551 = vmatpush1.msra.mxu0 0.0
        %552 = vmatprep.subr.mxu0 0.0
        %553 = vmatpush1.msra.mxu0 0.0
        %554 = vmatprep.subr.mxu0 0.0
        %555 = vmatpush1.msra.mxu0 0.0
        %556 = vmatprep.subr.mxu0 0.0
        %557 = vmatpush1.msra.mxu0 0.0
        %558 = vmatprep.subr.mxu0 0.0
        %559 = vmatpush1.msra.mxu0 0.0
        %560 = vmatprep.subr.mxu0 0.0
        %561 = vmatpush1.msra.mxu0 0.0
        %562 = vmatprep.subr.mxu0 0.0
        %563 = vmatpush1.msra.mxu0 0.0
        %564 = vmatprep.subr.mxu0 0.0
        %565 = vmatpush1.msra.mxu0 0.0
        %566 = vmatprep.subr.mxu0 0.0
        %567 = vmatpush1.msra.mxu0 0.0
        %568 = vmatprep.subr.mxu0 0.0
        %569 = vmatpush1.msra.mxu0 0.0
        %570 = vmatprep.subr.mxu0 0.0
        %571 = vmatpush1.msra.mxu0 0.0
        %572 = vmatprep.mubr.f32.mxu0 0.0
        %573 = vmatmul.mubr.f32.gmra.mrb[0].mxu0 %v506
        %v574 = vpop.f32.mrb[0].mxu0
        %v575 = vadd.f32 0.0, %v574
        %v576 = vpop.f32.mrb[0].mxu0
        %577 = vdwg.mxu0
        %v578 = vadd.f32 %v501, %v575
        %vm579 = vcmask 253952
        %580 = vst.msk [vmem:[#allocation2] sm:$0x1] %vm579, %v578
        %v581 = vld [vmem:[#allocation3] sm:$0x1]
        %v582 = vld [vmem:[%s484] sm:$0x1]
        %v583 = vld [vmem:[%s413] sm:$0xff]
        %v585 = vsel %vm504, %v582, 0
        %587 = vmatprep.subr.mxu0 0.0
        %588 = vmatpush1.msra.mxu0 %v583
        %589 = vmatprep.subr.mxu0 0.0
        %590 = vmatpush1.msra.mxu0 0.0
        %591 = vmatprep.subr.mxu0 0.0
        %592 = vmatpush1.msra.mxu0 0.0
        %593 = vmatprep.subr.mxu0 0.0
        %594 = vmatpush1.msra.mxu0 0.0
        %595 = vmatprep.subr.mxu0 0.0
        %596 = vmatpush1.msra.mxu0 0.0
        %597 = vmatprep.subr.mxu0 0.0
        %598 = vmatpush1.msra.mxu0 0.0
        %599 = vmatprep.subr.mxu0 0.0
        %600 = vmatpush1.msra.mxu0 0.0
        %601 = vmatprep.subr.mxu0 0.0
        %602 = vmatpush1.msra.mxu0 0.0
        %603 = vmatprep.subr.mxu0 0.0
        %604 = vmatpush1.msra.mxu0 0.0
        %605 = vmatprep.subr.mxu0 0.0
        %606 = vmatpush1.msra.mxu0 0.0
        %607 = vmatprep.subr.mxu0 0.0
        %608 = vmatpush1.msra.mxu0 0.0
        %609 = vmatprep.subr.mxu0 0.0
        %610 = vmatpush1.msra.mxu0 0.0
        %611 = vmatprep.subr.mxu0 0.0
        %612 = vmatpush1.msra.mxu0 0.0
        %613 = vmatprep.subr.mxu0 0.0
        %614 = vmatpush1.msra.mxu0 0.0
        %615 = vmatprep.subr.mxu0 0.0
        %616 = vmatpush1.msra.mxu0 0.0
        %617 = vmatprep.subr.mxu0 0.0
        %618 = vmatpush1.msra.mxu0 0.0
        %619 = vmatprep.subr.mxu0 0.0
        %620 = vmatpush1.msra.mxu0 0.0
        %621 = vmatprep.subr.mxu0 0.0
        %622 = vmatpush1.msra.mxu0 0.0
        %623 = vmatprep.subr.mxu0 0.0
        %624 = vmatpush1.msra.mxu0 0.0
        %625 = vmatprep.subr.mxu0 0.0
        %626 = vmatpush1.msra.mxu0 0.0
        %627 = vmatprep.subr.mxu0 0.0
        %628 = vmatpush1.msra.mxu0 0.0
        %629 = vmatprep.subr.mxu0 0.0
        %630 = vmatpush1.msra.mxu0 0.0
        %631 = vmatprep.subr.mxu0 0.0
        %632 = vmatpush1.msra.mxu0 0.0
        %633 = vmatprep.subr.mxu0 0.0
        %634 = vmatpush1.msra.mxu0 0.0
        %635 = vmatprep.subr.mxu0 0.0
        %636 = vmatpush1.msra.mxu0 0.0
        %637 = vmatprep.subr.mxu0 0.0
        %638 = vmatpush1.msra.mxu0 0.0
        %639 = vmatprep.subr.mxu0 0.0
        %640 = vmatpush1.msra.mxu0 0.0
        %641 = vmatprep.subr.mxu0 0.0
        %642 = vmatpush1.msra.mxu0 0.0
        %643 = vmatprep.subr.mxu0 0.0
        %644 = vmatpush1.msra.mxu0 0.0
        %645 = vmatprep.subr.mxu0 0.0
        %646 = vmatpush1.msra.mxu0 0.0
        %647 = vmatprep.subr.mxu0 0.0
        %648 = vmatpush1.msra.mxu0 0.0
        %649 = vmatprep.subr.mxu0 0.0
        %650 = vmatpush1.msra.mxu0 0.0
        %651 = vmatprep.mubr.f32.mxu0 0.0
        %652 = vmatmul.mubr.f32.gmra.mrb[0].mxu0 %v585
        %v653 = vpop.f32.mrb[0].mxu0
        %v654 = vadd.f32 0.0, %v653
        %v655 = vpop.f32.mrb[0].mxu0
        %656 = vdwg.mxu0
        %v657 = vadd.f32 %v581, %v654
        %658 = vst.msk [vmem:[#allocation3] sm:$0x1] %vm579, %v657
        // Predicated region
        $region69: #{tpu_custom_call.1} parent=55 // pred_check
          %p659 = pneg %p494
        $region70: #{tpu_custom_call.1} parent=55 // pred_check_branch
          %661 = sbr.rel (%p659) target = $region72
        $region71: #{tpu_custom_call.1} parent=55 // pred_region
          %v662 = vld [vmem:[%s7] sm:$0xff]
          %v663 = vld [vmem:[%s7 + $0x8] sm:$0xff]
          %v664 = vld [vmem:[%s7 + $0x10] sm:$0xff]
          %v665 = vld [vmem:[%s7 + $0x18] sm:$0xff]
          %v666 = vld [vmem:[%s8] sm:$0x1]
          %v667 = vld [vmem:[#allocation2] sm:$0x1]
          %v668 = vld [vmem:[%s487] sm:$0x1]
          %670 = vset.pattern.permute.xlu0 0
          %671 = vperm.xlu0 %670, %v668
          %v672 = vpop.permute.xlu0 %671
          %v674 = vlaneseq
          %v675 = vshrl.u32 %v674, 7
          %v676 = vsub.s32 0, %v675
          %v677 = vrot.slane %v672, %v676
          %v678 = vrcp.pop %v677
          %v679 = vmul.f32 %v667, %v678
          %v680 = vld [vmem:[#allocation3] sm:$0x1]
          %v681 = vld [vmem:[%s490] sm:$0x1]
          %683 = vset.pattern.permute.xlu0 0
          %684 = vperm.xlu0 %683, %v681
          %v685 = vpop.permute.xlu0 %684
          %v687 = vlaneseq
          %v688 = vshrl.u32 %v687, 7
          %v689 = vsub.s32 0, %v688
          %v690 = vrot.slane %v685, %v689
          %v691 = vrcp.pop %v690
          %v692 = vmul.f32 %v680, %v691
          %vm693 = vcmask 261120
          %v695 = vsel %vm693, %v679, 0
          %697 = vmatprep.subr.mxu0 0.0
          %698 = vmatpush1.msra.mxu0 %v662
          %699 = vmatprep.subr.mxu0 0.0
          %700 = vmatpush1.msra.mxu0 %v663
          %701 = vmatprep.subr.mxu0 0.0
          %702 = vmatpush1.msra.mxu0 %v664
          %703 = vmatprep.subr.mxu0 0.0
          %704 = vmatpush1.msra.mxu0 %v665
          %705 = vmatprep.subr.mxu0 0.0
          %706 = vmatpush1.msra.mxu0 0.0
          %707 = vmatprep.subr.mxu0 0.0
          %708 = vmatpush1.msra.mxu0 0.0
          %709 = vmatprep.subr.mxu0 0.0
          %710 = vmatpush1.msra.mxu0 0.0
          %711 = vmatprep.subr.mxu0 0.0
          %712 = vmatpush1.msra.mxu0 0.0
          %713 = vmatprep.subr.mxu0 0.0
          %714 = vmatpush1.msra.mxu0 0.0
          %715 = vmatprep.subr.mxu0 0.0
          %716 = vmatpush1.msra.mxu0 0.0
          %717 = vmatprep.subr.mxu0 0.0
          %718 = vmatpush1.msra.mxu0 0.0
          %719 = vmatprep.subr.mxu0 0.0
          %720 = vmatpush1.msra.mxu0 0.0
          %721 = vmatprep.subr.mxu0 0.0
          %722 = vmatpush1.msra.mxu0 0.0
          %723 = vmatprep.subr.mxu0 0.0
          %724 = vmatpush1.msra.mxu0 0.0
          %725 = vmatprep.subr.mxu0 0.0
          %726 = vmatpush1.msra.mxu0 0.0
          %727 = vmatprep.subr.mxu0 0.0
          %728 = vmatpush1.msra.mxu0 0.0
          %729 = vmatprep.subr.mxu0 0.0
          %730 = vmatpush1.msra.mxu0 0.0
          %731 = vmatprep.subr.mxu0 0.0
          %732 = vmatpush1.msra.mxu0 0.0
          %733 = vmatprep.subr.mxu0 0.0
          %734 = vmatpush1.msra.mxu0 0.0
          %735 = vmatprep.subr.mxu0 0.0
          %736 = vmatpush1.msra.mxu0 0.0
          %737 = vmatprep.subr.mxu0 0.0
          %738 = vmatpush1.msra.mxu0 0.0
          %739 = vmatprep.subr.mxu0 0.0
          %740 = vmatpush1.msra.mxu0 0.0
          %741 = vmatprep.subr.mxu0 0.0
          %742 = vmatpush1.msra.mxu0 0.0
          %743 = vmatprep.subr.mxu0 0.0
          %744 = vmatpush1.msra.mxu0 0.0
          %745 = vmatprep.subr.mxu0 0.0
          %746 = vmatpush1.msra.mxu0 0.0
          %747 = vmatprep.subr.mxu0 0.0
          %748 = vmatpush1.msra.mxu0 0.0
          %749 = vmatprep.subr.mxu0 0.0
          %750 = vmatpush1.msra.mxu0 0.0
          %751 = vmatprep.subr.mxu0 0.0
          %752 = vmatpush1.msra.mxu0 0.0
          %753 = vmatprep.subr.mxu0 0.0
          %754 = vmatpush1.msra.mxu0 0.0
          %755 = vmatprep.subr.mxu0 0.0
          %756 = vmatpush1.msra.mxu0 0.0
          %757 = vmatprep.subr.mxu0 0.0
          %758 = vmatpush1.msra.mxu0 0.0
          %759 = vmatprep.subr.mxu0 0.0
          %760 = vmatpush1.msra.mxu0 0.0
          %761 = vmatprep.mubr.f32.mxu0 0.0
          %762 = vmatmul.mubr.f32.gmra.mrb[0].mxu0 %v695
          %v763 = vpop.f32.mrb[0].mxu0
          %v764 = vadd.f32 %v666, %v763
          %v765 = vpop.f32.mrb[0].mxu0
          %766 = vdwg.mxu0
          %v768 = vsel %vm693, %v692, 0
          %770 = vmatprep.subr.mxu0 0.0
          %771 = vmatpush1.msra.mxu0 %v662
          %772 = vmatprep.subr.mxu0 0.0
          %773 = vmatpush1.msra.mxu0 %v663
          %774 = vmatprep.subr.mxu0 0.0
          %775 = vmatpush1.msra.mxu0 %v664
          %776 = vmatprep.subr.mxu0 0.0
          %777 = vmatpush1.msra.mxu0 %v665
          %778 = vmatprep.subr.mxu0 0.0
          %779 = vmatpush1.msra.mxu0 0.0
          %780 = vmatprep.subr.mxu0 0.0
          %781 = vmatpush1.msra.mxu0 0.0
          %782 = vmatprep.subr.mxu0 0.0
          %783 = vmatpush1.msra.mxu0 0.0
          %784 = vmatprep.subr.mxu0 0.0
          %785 = vmatpush1.msra.mxu0 0.0
          %786 = vmatprep.subr.mxu0 0.0
          %787 = vmatpush1.msra.mxu0 0.0
          %788 = vmatprep.subr.mxu0 0.0
          %789 = vmatpush1.msra.mxu0 0.0
          %790 = vmatprep.subr.mxu0 0.0
          %791 = vmatpush1.msra.mxu0 0.0
          %792 = vmatprep.subr.mxu0 0.0
          %793 = vmatpush1.msra.mxu0 0.0
          %794 = vmatprep.subr.mxu0 0.0
          %795 = vmatpush1.msra.mxu0 0.0
          %796 = vmatprep.subr.mxu0 0.0
          %797 = vmatpush1.msra.mxu0 0.0
          %798 = vmatprep.subr.mxu0 0.0
          %799 = vmatpush1.msra.mxu0 0.0
          %800 = vmatprep.subr.mxu0 0.0
          %801 = vmatpush1.msra.mxu0 0.0
          %802 = vmatprep.subr.mxu0 0.0
          %803 = vmatpush1.msra.mxu0 0.0
          %804 = vmatprep.subr.mxu0 0.0
          %805 = vmatpush1.msra.mxu0 0.0
          %806 = vmatprep.subr.mxu0 0.0
          %807 = vmatpush1.msra.mxu0 0.0
          %808 = vmatprep.subr.mxu0 0.0
          %809 = vmatpush1.msra.mxu0 0.0
          %810 = vmatprep.subr.mxu0 0.0
          %811 = vmatpush1.msra.mxu0 0.0
          %812 = vmatprep.subr.mxu0 0.0
          %813 = vmatpush1.msra.mxu0 0.0
          %814 = vmatprep.subr.mxu0 0.0
          %815 = vmatpush1.msra.mxu0 0.0
          %816 = vmatprep.subr.mxu0 0.0
          %817 = vmatpush1.msra.mxu0 0.0
          %818 = vmatprep.subr.mxu0 0.0
          %819 = vmatpush1.msra.mxu0 0.0
          %820 = vmatprep.subr.mxu0 0.0
          %821 = vmatpush1.msra.mxu0 0.0
          %822 = vmatprep.subr.mxu0 0.0
          %823 = vmatpush1.msra.mxu0 0.0
          %824 = vmatprep.subr.mxu0 0.0
          %825 = vmatpush1.msra.mxu0 0.0
          %826 = vmatprep.subr.mxu0 0.0
          %827 = vmatpush1.msra.mxu0 0.0
          %828 = vmatprep.subr.mxu0 0.0
          %829 = vmatpush1.msra.mxu0 0.0
          %830 = vmatprep.subr.mxu0 0.0
          %831 = vmatpush1.msra.mxu0 0.0
          %832 = vmatprep.subr.mxu0 0.0
          %833 = vmatpush1.msra.mxu0 0.0
          %834 = vmatprep.mubr.f32.mxu0 0.0
          %835 = vmatmul.mubr.f32.gmra.mrb[0].mxu0 %v768
          %v836 = vpop.f32.mrb[0].mxu0
          %v837 = vadd.f32 %v666, %v836
          %v838 = vpop.f32.mrb[0].mxu0
          %839 = vdwg.mxu0
          %v840 = vmul.f32 %v764, %v764
          %vm841 = vcmask 1040384
          %v842 = vsel %vm841, %v840, 0.0
          %843 = vadd.xlane.f32.xlu0 %v842
          %v844 = vpop.xlane.xlu0 %843
          %v845 = vmax.f32 %v844, 1e-24
          %v846 = vrsqrt.pop %v845
          %v847 = vmul.f32 %v837, %v837
          %v848 = vsel %vm841, %v847, 0.0
          %849 = vadd.xlane.f32.xlu0 %v848
          %v850 = vpop.xlane.xlu0 %849
          %v851 = vmax.f32 %v850, 1e-24
          %v852 = vrsqrt.pop %v851
          %v853 = vmul.f32 %v764, %v846
          %v854 = vmul.f32 %v837, %v852
          %v855 = vmul.f32 %v853, %v854
          %v856 = vsel %vm841, %v855, 0.0
          %857 = vadd.xlane.f32.xlu0 %v856
          %v858 = vpop.xlane.xlu0 %857
          %v859 = vld [vmem:[%s493] sm:$0x1]
          %v860 = vsub.f32 %v858, %v859
          %v861 = vmul.f32 %v860, %v860
          %863 = vset.pattern.permute.xlu0 0
          %864 = vperm.xlu0 %863, %v861
          %v865 = vpop.permute.xlu0 %864
          %867 = vst [vmem:[%s472] sm:$0x1] %v865
        $region72: #{tpu_custom_call.1} parent=55 // pred_fallthru
          _
        %s868 = sand.u32 %s281, 1
        %s869 = scalar_lea.sflag [#allocation6], %s868
        %s870 = sand.u32 %s281, 1
        %s871 = scalar_lea.vmem [#allocation9], %s870
        // Predicated region
        $region73: #{tpu_custom_call.1} parent=55 // pred_check
          %p872 = pneg %p291
        $region74: #{tpu_custom_call.1} parent=55 // pred_check_branch
          %874 = sbr.rel (%p872) target = $region76
        $region75: #{tpu_custom_call.1} parent=55 // pred_region
          %s876 = ssub.s32 16, 16
          %877 = vsyncadd %s869, %s876
          %s878 = smul.addr %s33, 16
          %s879 = scalar_lea.hbm %s9, %s878
          %s881 = sshll.u32 %s871, 4
          %s882 = int_to_ptr.vmem [resolvable:$true] %s881
          %884 = dma.vmem_to_hbm [thread:$0]  %s882, 16, %s879, %s869
        $region76: #{tpu_custom_call.1} parent=55 // pred_fallthru
          _
      $region56: #{tpu_custom_call.1} parent=5 // pred_fallthru
        _
      %p885 = scmp.le.s32.totalorder 2, %s24
      // Predicated region
      $region77: #{tpu_custom_call.1} parent=5 // pred_check
        %p886 = pneg %p885
      $region78: #{tpu_custom_call.1} parent=5 // pred_check_branch
        %888 = sbr.rel (%p886) target = $region80
      $region79: #{tpu_custom_call.1} parent=5 // pred_region
        %s889 = ssub.s32 %s24, 2
        // Predicated region
        $region81: #{tpu_custom_call.1} parent=79 // pred_check
          %p890 = pneg %p297
        $region82: #{tpu_custom_call.1} parent=79 // pred_check_branch
          %892 = sbr.rel (%p890) target = $region84
        $region83: #{tpu_custom_call.1} parent=79 // pred_region
          %s893 = sand.u32 %s282, 1
          %s894 = scalar_lea.sflag [#allocation6], %s893
          %s895 = sand.u32 %s282, 1
          %s896 = scalar_lea.vmem [#allocation9], %s895
          %897 = dma.done %s894, 16
        $region84: #{tpu_custom_call.1} parent=79 // pred_fallthru
          _
      $region80: #{tpu_custom_call.1} parent=5 // pred_fallthru
        _
    $region6: #{tpu_custom_call.1} parent=1 // loop_footer
      %s28 = sadd.s32 1, %s24
    $region7: #{tpu_custom_call.1} parent=1 // loop_footer_branch
      %23 = sbr.rel target = $region3
    $region8: #{tpu_custom_call.1} parent=1 // loop_exit
      _
    %898 = vsyncpa [#allocation5], 1
    %s899 = scalar_lea.sflag [#allocation5], 1
    %900 = vsyncpa %s899, 1
    %901 = vsyncpa [#allocation8], 1
    %s902 = scalar_lea.sflag [#allocation8], 1
    %903 = vsyncpa %s902, 1
    %904 = vsyncpa [#allocation6], 1
    %s905 = scalar_lea.sflag [#allocation6], 1
    %906 = vsyncpa %s905, 1

</llo_original>
